<compile_context>
chip_gen: v7x
topology: tpu7x:2x2x1
jax: 0.10.0
libtpu: 0.0.40
codegen_flags: <defaults>
</compile_context>

<pallas_src>
import functools

import jax
import jax.numpy as jnp
from jax.experimental import pallas as pl
from jax.experimental.pallas import tpu as pltpu


def _local_op_kernel(x_ref, w1_ref, w2_ref, shift_ref, o_ref, *, tile_bn, s):
    # x_ref    : (tile_bn*s, D)   f32        flattened points for this block of samples
    # w1_ref   : (D, Cp)          bf16/f32   conv1 weight with BN1 scale folded in
    # w2_ref   : (Cp, Cp)         bf16/f32   conv2 weight with BN2 scale folded in
    # shift_ref: (2, Cp)          f32        [bn1 shift ; bn2 shift] (0 in padded lanes)
    # o_ref    : (tile_bn, Cp)    f32        per-sample max-pooled features
    w1 = w1_ref[...]
    w2 = w2_ref[...]
    sh = shift_ref[...]
    b1 = sh[0:1, :]                                                       # (1, Cp)
    b2 = sh[1:2, :]                                                       # (1, Cp)

    # Cast x in-kernel (VPU filler hidden under DMA/MXU) instead of a separate
    # wrapper-side XLA convert pass over the dominant array.
    x = x_ref[...].astype(w1.dtype)                                       # (M, D)

    h = jnp.dot(x, w1, preferred_element_type=jnp.float32)                # (M, Cp) f32
    h = jnp.maximum(h + b1, 0.0)                                          # BN1 shift + ReLU
    h = jnp.dot(h.astype(w2.dtype), w2,
                preferred_element_type=jnp.float32)                       # (M, Cp) f32
    h = jnp.maximum(h + b2, 0.0)                                          # BN2 shift + ReLU

    # adaptive_max_pool1d(., 1): max over the s points of each sample.
    # NOTE: free sublane regroup when s % 8 == 0; otherwise a relayout copy (perf only).
    h = h.reshape(tile_bn, s, h.shape[-1])                                # (tile_bn, s, Cp)
    o_ref[...] = jnp.max(h, axis=1)                                       # (tile_bn, Cp)


def _round_up(v, m):
    return (v + m - 1) // m * m


def _pick_tile_bn(bn, s, d, c_pad, *, target_m=2048, vmem_budget=12 << 20):
    """Rows-per-step picker.  tile_bn is always a multiple of 8 (f32 sublane); bn is
    padded up to a multiple of it by the wrapper.  The block size is capped so the
    working set fits the smallest default scoped-VMEM limit (v5e: 16 MiB), which also
    keeps it well under v7x's 64 MiB physical VMEM."""

    def vmem_bytes(t):
        m = t * s
        x_blk = m * d * 4 * 2                              # f32 input block, double-buffered
        out_blk = t * c_pad * 4 * 2                        # f32 output block, double-buffered
        mids = m * c_pad * 4 * 3                           # f32 intermediates + headroom
        wts = (d * c_pad + c_pad * c_pad) * 4 * 2 + 2 * c_pad * 4 * 2
        return x_blk + out_blk + mids + wts

    tile_bn = max(8, _round_up(pl.cdiv(target_m, s), 8))
    while tile_bn > 8 and vmem_bytes(tile_bn) > vmem_budget:
        tile_bn -= 8
    # No point tiling wider than the (padded) problem.
    tile_bn = min(tile_bn, _round_up(bn, 8))
    # Prefer >=2 grid steps so ("parallel",) can shard across both v7x TensorCores;
    # the extra ~0.35 us step overhead is negligible on single-TC v5e/v6e.
    while pl.cdiv(bn, tile_bn) < 2 and tile_bn > 8:
        tile_bn -= 8
    return tile_bn


def local_op(x, w1, w2, scale1, shift1, scale2, shift2, *, use_bf16=True):
    """x: (b, n, s, d) f32.  w1: (d, c), w2: (c, c).  scale*/shift*: (c,) folded BN.

    Returns (b, c, n), matching the PyTorch Local_op forward (eval-mode BN)."""
    b, n, s, d = x.shape
    c = w1.shape[1]
    bn = b * n

    compute_dtype = jnp.bfloat16 if use_bf16 else jnp.float32
    c_pad = _round_up(max(c, 128), 128)                    # lane-dense weights & stores

    tile_bn = _pick_tile_bn(bn, s, d, c_pad)
    grid = (pl.cdiv(bn, tile_bn),)
    bn_pad = grid[0] * tile_bn

    # Fold the eval-mode BN scale into the conv weights (per output channel).  Channel
    # padding is zeros, and the padded shifts are 0, so padded output channels are
    # exactly 0 and are sliced away below.
    w1s = jnp.pad((w1 * scale1[None, :]).astype(compute_dtype),
                  ((0, 0), (0, c_pad - c)))                                # (d, Cp)
    w2s = jnp.pad((w2 * scale2[None, :]).astype(compute_dtype),
                  ((0, c_pad - c), (0, c_pad - c)))                        # (Cp, Cp)
    shifts = jnp.pad(jnp.stack([shift1, shift2], axis=0).astype(jnp.float32),
                     ((0, 0), (0, c_pad - c)))                             # (2, Cp)

    # permute(0,1,3,2).reshape(-1,d,s) + channels-last transpose == flatten all points.
    # Keep x in its original dtype (cast happens in-kernel); pad samples only if needed.
    x_flat = x.reshape(bn, s, d)
    if bn_pad != bn:
        x_flat = jnp.pad(x_flat, ((0, bn_pad - bn), (0, 0), (0, 0)))
    x_flat = x_flat.reshape(bn_pad * s, d)

    kernel = functools.partial(_local_op_kernel, tile_bn=tile_bn, s=s)

    out = pl.pallas_call(
        kernel,
        out_shape=jax.ShapeDtypeStruct((bn_pad, c_pad), jnp.float32),
        grid=grid,
        in_specs=[
            pl.BlockSpec((tile_bn * s, d), lambda i: (i, 0)),   # this block's points
            pl.BlockSpec((d, c_pad), lambda i: (0, 0)),         # W1 (broadcast)
            pl.BlockSpec((c_pad, c_pad), lambda i: (0, 0)),     # W2 (broadcast)
            pl.BlockSpec((2, c_pad), lambda i: (0, 0)),         # merged BN shifts
        ],
        out_specs=pl.BlockSpec((tile_bn, c_pad), lambda i: (i, 0)),
        compiler_params=pltpu.CompilerParams(dimension_semantics=("parallel",)),
    )(x_flat, w1s, w2s, shifts)

    pooled = out[:bn, :c].reshape(b, n, c)     # drop sample / channel padding
    return jnp.transpose(pooled, (0, 2, 1))    # (b, C, n)


def _fold_bn(gamma, beta, mean, var, eps=1e-5):
    scale = gamma / jnp.sqrt(var + eps)
    shift = beta - mean * scale
    return scale, shift


def _reference(x, w1, w2, scale1, shift1, scale2, shift2):
    b, n, s, d = x.shape
    xf = x.reshape(b * n, s, d).astype(jnp.float32)
    h = jnp.einsum("bsd,dc->bsc", xf, w1)
    h = jnp.maximum(h * scale1 + shift1, 0.0)
    h = jnp.einsum("bsc,ce->bse", h, w2)
    h = jnp.maximum(h * scale2 + shift2, 0.0)
    pooled = jnp.max(h, axis=1).reshape(b, n, -1)
    return jnp.transpose(pooled, (0, 2, 1))


if __name__ == "__main__":
    key = jax.random.PRNGKey(0)
    b, n, s, d = 2, 8, 16, 32      # in_channels = d = 32
    c = 64                          # out_channels

    keys = jax.random.split(key, 10)
    x = jax.random.normal(keys[0], (b, n, s, d), dtype=jnp.float32)

    # Conv1d weights (out, in, 1) with no bias -> transposed for channels-last matmul.
    w1 = (jax.random.normal(keys[1], (c, d), dtype=jnp.float32) * 0.1).T   # (d, c)
    w2 = (jax.random.normal(keys[2], (c, c), dtype=jnp.float32) * 0.1).T   # (c, c)

    # Deterministic BatchNorm (eval-mode running stats), folded into scale/shift.
    gamma1 = 1.0 + 0.1 * jax.random.normal(keys[3], (c,), dtype=jnp.float32)
    beta1 = 0.1 * jax.random.normal(keys[4], (c,), dtype=jnp.float32)
    mean1 = 0.1 * jax.random.normal(keys[5], (c,), dtype=jnp.float32)
    var1 = 0.5 + jnp.abs(jax.random.normal(keys[6], (c,), dtype=jnp.float32))
    gamma2 = 1.0 + 0.1 * jax.random.normal(keys[7], (c,), dtype=jnp.float32)
    beta2 = 0.1 * jax.random.normal(keys[8], (c,), dtype=jnp.float32)
    mean2 = 0.1 * jax.random.normal(keys[9], (c,), dtype=jnp.float32)
    var2 = 0.5 + jnp.abs(jax.random.normal(keys[0], (c,), dtype=jnp.float32))

    s1, b1 = _fold_bn(gamma1, beta1, mean1, var1)
    s2, b2 = _fold_bn(gamma2, beta2, mean2, var2)

    out = jax.block_until_ready(local_op(x, w1, w2, s1, b1, s2, b2))
    ref = _reference(x, w1, w2, s1, b1, s2, b2)

    assert out.shape == (b, c, n), out.shape
    # bf16 matmul operands (f32 accumulate) -> slightly looser tolerance than pure f32.
    assert jnp.allclose(out, ref, atol=2e-2, rtol=2e-2), float(jnp.max(jnp.abs(out - ref)))

    # Also sanity-check the exact f32-operand path.
    out_f32 = jax.block_until_ready(
        local_op(x, w1, w2, s1, b1, s2, b2, use_bf16=False))
    assert jnp.allclose(out_f32, ref, atol=1e-5, rtol=1e-5), \
        float(jnp.max(jnp.abs(out_f32 - ref)))
    print("KERNEL_OK")
</pallas_src>

<mosaic_0001>
module attributes {stable_mosaic.version = 11 : i64} {
  func.func @_local_op_kernel(%arg0: i32, %arg1: memref<128x32xf32, #tpu.memory_space<vmem>>, %arg2: memref<32x128xbf16, #tpu.memory_space<vmem>>, %arg3: memref<128x128xbf16, #tpu.memory_space<vmem>>, %arg4: memref<2x128xf32, #tpu.memory_space<vmem>>, %arg5: memref<8x128xf32, #tpu.memory_space<vmem>>) attributes {dimension_semantics = [#tpu.dimension_semantics<parallel>], iteration_bounds = array<i64: 2>, scalar_prefetch = 0 : i64, scratch_operands = 0 : i64, tpu.core_type = #tpu.core_type<tc>, window_params = [{transform_indices = @transform_0, window_bounds = array<i64: 128, 32>}, {pipeline_mode = #tpu.pipeline_mode<synchronous>, transform_indices = @transform_1, window_bounds = array<i64: 32, 128>}, {pipeline_mode = #tpu.pipeline_mode<synchronous>, transform_indices = @transform_2, window_bounds = array<i64: 128, 128>}, {pipeline_mode = #tpu.pipeline_mode<synchronous>, transform_indices = @transform_3, window_bounds = array<i64: 2, 128>}, {transform_indices = @transform_4, window_bounds = array<i64: 8, 128>}]} {
    %c0 = arith.constant 0 : index
    %c0_0 = arith.constant 0 : index
    %0 = vector.load %arg2[%c0, %c0_0] : memref<32x128xbf16, #tpu.memory_space<vmem>>, vector<32x128xbf16>
    %c0_1 = arith.constant 0 : index
    %c0_2 = arith.constant 0 : index
    %1 = vector.load %arg3[%c0_1, %c0_2] : memref<128x128xbf16, #tpu.memory_space<vmem>>, vector<128x128xbf16>
    %c0_3 = arith.constant 0 : index
    %c0_4 = arith.constant 0 : index
    %2 = vector.load %arg4[%c0_3, %c0_4] : memref<2x128xf32, #tpu.memory_space<vmem>>, vector<2x128xf32>
    %3 = vector.extract_strided_slice %2 {offsets = [0, 0], sizes = [1, 128], strides = [1, 1]} : vector<2x128xf32> to vector<1x128xf32>
    %4 = vector.extract_strided_slice %2 {offsets = [1, 0], sizes = [1, 128], strides = [1, 1]} : vector<2x128xf32> to vector<1x128xf32>
    %c0_5 = arith.constant 0 : index
    %c0_6 = arith.constant 0 : index
    %5 = vector.load %arg1[%c0_5, %c0_6] : memref<128x32xf32, #tpu.memory_space<vmem>>, vector<128x32xf32>
    %6 = arith.truncf %5 : vector<128x32xf32> to vector<128x32xbf16>
    %cst = arith.constant dense<0.000000e+00> : vector<128x128xf32>
    %7 = tpu.matmul %6, %0, %cst {dimension_numbers = #tpu.dot_dimension_numbers<[1], [0], [0], [1], [0, 0, 1, 1], [], []>} : vector<128x32xbf16>, vector<32x128xbf16>, vector<128x128xf32> -> vector<128x128xf32>
    %8 = vector.broadcast %3 : vector<1x128xf32> to vector<128x128xf32>
    %9 = arith.addf %7, %8 : vector<128x128xf32>
    %cst_7 = arith.constant 0.000000e+00 : f32
    %10 = vector.broadcast %cst_7 : f32 to vector<128x128xf32>
    %11 = arith.maximumf %9, %10 : vector<128x128xf32>
    %12 = arith.truncf %11 : vector<128x128xf32> to vector<128x128xbf16>
    %cst_8 = arith.constant dense<0.000000e+00> : vector<128x128xf32>
    %13 = tpu.matmul %12, %1, %cst_8 {dimension_numbers = #tpu.dot_dimension_numbers<[1], [0], [0], [1], [0, 0, 1, 1], [], []>} : vector<128x128xbf16>, vector<128x128xbf16>, vector<128x128xf32> -> vector<128x128xf32>
    %14 = vector.broadcast %4 : vector<1x128xf32> to vector<128x128xf32>
    %15 = arith.addf %13, %14 : vector<128x128xf32>
    %cst_9 = arith.constant 0.000000e+00 : f32
    %16 = vector.broadcast %cst_9 : f32 to vector<128x128xf32>
    %17 = arith.maximumf %15, %16 : vector<128x128xf32>
    %18 = vector.shape_cast %17 : vector<128x128xf32> to vector<8x16x128xf32>
    %cst_10 = arith.constant dense<0xFF800000> : vector<8x128xf32>
    %19 = vector.multi_reduction <maximumf>, %18, %cst_10 [1] : vector<8x16x128xf32> to vector<8x128xf32>
    %c0_11 = arith.constant 0 : index
    %c0_12 = arith.constant 0 : index
    %20 = vector.load %arg5[%c0_11, %c0_12] : memref<8x128xf32, #tpu.memory_space<vmem>>, vector<8x128xf32>
    tpu.vector_store %arg5[%c0_11, %c0_12], %19 {strides = array<i32>} : memref<8x128xf32, #tpu.memory_space<vmem>>, vector<8x128xf32>,
    return
  }
  func.func @transform_0(%arg0: i32) -> (i32, i32) {
    %c0_i32 = arith.constant 0 : i32
    %c0_i32_0 = arith.constant 0 : i32
    return %arg0, %c0_i32 : i32, i32
  }
  func.func @transform_1(%arg0: i32) -> (i32, i32) {
    %c0_i32 = arith.constant 0 : i32
    %c0_i32_0 = arith.constant 0 : i32
    %c0_i32_1 = arith.constant 0 : i32
    return %c0_i32, %c0_i32_0 : i32, i32
  }
  func.func @transform_2(%arg0: i32) -> (i32, i32) {
    %c0_i32 = arith.constant 0 : i32
    %c0_i32_0 = arith.constant 0 : i32
    %c0_i32_1 = arith.constant 0 : i32
    return %c0_i32, %c0_i32_0 : i32, i32
  }
  func.func @transform_3(%arg0: i32) -> (i32, i32) {
    %c0_i32 = arith.constant 0 : i32
    %c0_i32_0 = arith.constant 0 : i32
    %c0_i32_1 = arith.constant 0 : i32
    return %c0_i32, %c0_i32_0 : i32, i32
  }
  func.func @transform_4(%arg0: i32) -> (i32, i32) {
    %c0_i32 = arith.constant 0 : i32
    %c0_i32_0 = arith.constant 0 : i32
    return %arg0, %c0_i32 : i32, i32
  }
}

</mosaic_0001>

<llo_original>
// kernel: tpu_custom_call.1
$region0: #{tpu_custom_call.1}
  #allocation0 [shape = 'u32[]', space=smem, size = 0x4, offset = 0x4, fixed_abs, tag = 'smem constant byte address 0x4 - core index']
  #allocation1 [shape = 'u32[144,128]{1,0:T(1,128)}', space=vmem, size = 0x12000, scoped, tag = 'internal scratch']
  %s0 = inlined_call_operand.vmem [shape: f32[256,32], index: 0, kind: input, shape index: {}]
  %s1 = inlined_call_operand.vmem [shape: bf16[32,128], index: 1, kind: input, shape index: {}]
  %s2 = inlined_call_operand.vmem [shape: bf16[128,128], index: 2, kind: input, shape index: {}]
  %s3 = inlined_call_operand.vmem [shape: f32[2,128], index: 3, kind: input, shape index: {}]
  %s4 = inlined_call_operand.hbm [shape: f32[16,128], index: 4, kind: output, shape index: {}]
  %s5 = sld [smem:[#allocation0]]
  $region49: #{tpu_custom_call.1} parent=0
    _
  %s7 = ssub.s32 1, %s5
  %s8 = scalar_select 0, %s7, %s5
  $region1: #{tpu_custom_call.1} parent=0
    #allocation2 [shape = 'u8[8192]{0}', space=vmem, size = 0x2000, scoped, tag = 'output window, operand 0']
    #allocation3 [shape = 's32[2]{0}', space=sflag, size = 0x8, scoped, tag = 'scoped memory for tpu_custom_call.1']
    %9 = vsyncpa [#allocation3], 0
    %s10 = scalar_lea.sflag [#allocation3], 1
    %11 = vsyncpa %s10, 0
    loop: start=0, step=1, limit=4
    $region2: #{tpu_custom_call.1} parent=1 // loop_pre_header
      _
    $region3: #{tpu_custom_call.1} parent=1 // loop_header
      %s13 = sphi 0, %s17
      %p14 = scmp.ge.s32.totalorder %s13, 4
      %s23 = sphi 0, %s25
      %s26 = sphi 0, %s23
      %s27 = sphi 0, %s26
      %s43 = sphi 0, %s27
      %s47 = sphi 0, %s47
      %s49 = sphi 0, %s47
      %s50 = sphi 0, %s49
      %s64 = sphi 0, %s50
      %s68 = sphi 0, %s68
      %s70 = sphi 0, %s68
      %s71 = sphi 0, %s70
      %s85 = sphi 0, %s71
      %s89 = sphi 0, %s89
      %s91 = sphi 0, %s89
      %s92 = sphi 0, %s91
      %s106 = sphi 0, %s92
      %s112 = sphi 0, %s114
      %s115 = sphi 0, %s112
      %s116 = sphi 0, %s115
      %s132 = sphi 0, %s116
    $region4: #{tpu_custom_call.1} parent=1 // loop_header_branch
      %16 = sbr.rel (%p14) target = $region8
    $region5: #{tpu_custom_call.1} parent=1 // loop_body
      %s18 = ssub.s32 %s13, 1
      %s19 = ssub.s32 %s13, 2
      %s20 = sadd.s32 %s13, 1
      %s21 = ssub.s32 %s13, %s20
      %p22 = scmp.eq.s32.totalorder %s21, 0
      %s24 = sadd.s32 %s23, 1
      %s25 = scalar_select %p22, %s23, %s24
      %p28 = pneg %p22
      %p29 = scmp.eq.s32.totalorder %s13, 1
      %p30 = por %p28, %p29
      %p31 = scmp.ne.s32.totalorder %s23, %s26
      %p32 = scmp.eq.s32.totalorder %s13, 0
      %p33 = por %p31, %p32
      %p34 = scmp.ne.s32.totalorder %s23, %s26
      %p35 = scmp.eq.s32.totalorder %s18, 1
      %p36 = por %p34, %p35
      %p37 = scmp.ne.s32.totalorder %s26, %s27
      %p38 = scmp.eq.s32.totalorder %s18, 0
      %p39 = por %p37, %p38
      %p40 = scmp.ne.s32.totalorder %s26, %s27
      %p41 = scmp.eq.s32.totalorder %s19, 1
      %p42 = por %p40, %p41
      %p44 = scmp.ne.s32.totalorder %s27, %s43
      %p45 = scmp.eq.s32.totalorder %s19, 0
      %p46 = por %p44, %p45
      %s48 = sadd.s32 %s47, 1
      %p51 = scmp.eq.s32.totalorder %s13, 1
      %p52 = scmp.ne.s32.totalorder %s47, %s49
      %p53 = scmp.eq.s32.totalorder %s13, 0
      %p54 = por %p52, %p53
      %p55 = scmp.ne.s32.totalorder %s47, %s49
      %p56 = scmp.eq.s32.totalorder %s18, 1
      %p57 = por %p55, %p56
      %p58 = scmp.ne.s32.totalorder %s49, %s50
      %p59 = scmp.eq.s32.totalorder %s18, 0
      %p60 = por %p58, %p59
      %p61 = scmp.ne.s32.totalorder %s49, %s50
      %p62 = scmp.eq.s32.totalorder %s19, 1
      %p63 = por %p61, %p62
      %p65 = scmp.ne.s32.totalorder %s50, %s64
      %p66 = scmp.eq.s32.totalorder %s19, 0
      %p67 = por %p65, %p66
      %s69 = sadd.s32 %s68, 1
      %p72 = scmp.eq.s32.totalorder %s13, 1
      %p73 = scmp.ne.s32.totalorder %s68, %s70
      %p74 = scmp.eq.s32.totalorder %s13, 0
      %p75 = por %p73, %p74
      %p76 = scmp.ne.s32.totalorder %s68, %s70
      %p77 = scmp.eq.s32.totalorder %s18, 1
      %p78 = por %p76, %p77
      %p79 = scmp.ne.s32.totalorder %s70, %s71
      %p80 = scmp.eq.s32.totalorder %s18, 0
      %p81 = por %p79, %p80
      %p82 = scmp.ne.s32.totalorder %s70, %s71
      %p83 = scmp.eq.s32.totalorder %s19, 1
      %p84 = por %p82, %p83
      %p86 = scmp.ne.s32.totalorder %s71, %s85
      %p87 = scmp.eq.s32.totalorder %s19, 0
      %p88 = por %p86, %p87
      %s90 = sadd.s32 %s89, 1
      %p93 = scmp.eq.s32.totalorder %s13, 1
      %p94 = scmp.ne.s32.totalorder %s89, %s91
      %p95 = scmp.eq.s32.totalorder %s13, 0
      %p96 = por %p94, %p95
      %p97 = scmp.ne.s32.totalorder %s89, %s91
      %p98 = scmp.eq.s32.totalorder %s18, 1
      %p99 = por %p97, %p98
      %p100 = scmp.ne.s32.totalorder %s91, %s92
      %p101 = scmp.eq.s32.totalorder %s18, 0
      %p102 = por %p100, %p101
      %p103 = scmp.ne.s32.totalorder %s91, %s92
      %p104 = scmp.eq.s32.totalorder %s19, 1
      %p105 = por %p103, %p104
      %p107 = scmp.ne.s32.totalorder %s92, %s106
      %p108 = scmp.eq.s32.totalorder %s19, 0
      %p109 = por %p107, %p108
      %s110 = ssub.s32 %s13, %s20
      %p111 = scmp.eq.s32.totalorder %s110, 0
      %s113 = sadd.s32 %s112, 1
      %s114 = scalar_select %p111, %s112, %s113
      %p117 = pneg %p111
      %p118 = scmp.eq.s32.totalorder %s13, 1
      %p119 = por %p117, %p118
      %p120 = scmp.ne.s32.totalorder %s112, %s115
      %p121 = scmp.eq.s32.totalorder %s13, 0
      %p122 = por %p120, %p121
      %p123 = scmp.ne.s32.totalorder %s112, %s115
      %p124 = scmp.eq.s32.totalorder %s18, 1
      %p125 = por %p123, %p124
      %p126 = scmp.ne.s32.totalorder %s115, %s116
      %p127 = scmp.eq.s32.totalorder %s18, 0
      %p128 = por %p126, %p127
      %p129 = scmp.ne.s32.totalorder %s115, %s116
      %p130 = scmp.eq.s32.totalorder %s19, 1
      %p131 = por %p129, %p130
      %p133 = scmp.ne.s32.totalorder %s116, %s132
      %p134 = scmp.eq.s32.totalorder %s19, 0
      %p135 = por %p133, %p134
      %p136 = scmp.le.s32.totalorder 1, %s13
      %p137 = scmp.lt.s32.totalorder %s13, 3
      %p138 = pnand %p136, %p137
      %p139 = pneg %p138
      // Predicated region
      $region9: #{tpu_custom_call.1} parent=5 // pred_check
        _
      $region10: #{tpu_custom_call.1} parent=5 // pred_check_branch
        %141 = sbr.rel (%p138) target = $region12
      $region11: #{tpu_custom_call.1} parent=5 // pred_region
        %s142 = ssub.s32 %s13, 1
        // Predicated region
        $region13: #{tpu_custom_call.1} parent=11 // pred_check
          %p143 = pneg %p60
        $region14: #{tpu_custom_call.1} parent=11 // pred_check_branch
          %145 = sbr.rel (%p143) target = $region16
        $region15: #{tpu_custom_call.1} parent=11 // pred_region
          _
        $region16: #{tpu_custom_call.1} parent=11 // pred_fallthru
          _
        // Predicated region
        $region17: #{tpu_custom_call.1} parent=11 // pred_check
          %p146 = pneg %p81
        $region18: #{tpu_custom_call.1} parent=11 // pred_check_branch
          %148 = sbr.rel (%p146) target = $region20
        $region19: #{tpu_custom_call.1} parent=11 // pred_region
          _
        $region20: #{tpu_custom_call.1} parent=11 // pred_fallthru
          _
        // Predicated region
        $region21: #{tpu_custom_call.1} parent=11 // pred_check
          %p149 = pneg %p102
        $region22: #{tpu_custom_call.1} parent=11 // pred_check_branch
          %151 = sbr.rel (%p149) target = $region24
        $region23: #{tpu_custom_call.1} parent=11 // pred_region
          _
        $region24: #{tpu_custom_call.1} parent=11 // pred_fallthru
          _
      $region12: #{tpu_custom_call.1} parent=5 // pred_fallthru
        _
      %p152 = scmp.lt.s32.totalorder %s13, 2
      // Predicated region
      $region25: #{tpu_custom_call.1} parent=5 // pred_check
        %p153 = pneg %p152
      $region26: #{tpu_custom_call.1} parent=5 // pred_check_branch
        %155 = sbr.rel (%p153) target = $region28
      $region27: #{tpu_custom_call.1} parent=5 // pred_region
        // Predicated region
        $region29: #{tpu_custom_call.1} parent=27 // pred_check
          %p156 = pneg %p33
        $region30: #{tpu_custom_call.1} parent=27 // pred_check_branch
          %158 = sbr.rel (%p156) target = $region32
        $region31: #{tpu_custom_call.1} parent=27 // pred_region
          %s159 = smul.u32 16, %s13
          %p160 = scmp.lt.s32.totalorder %s159, 31
          %s161 = scalar_select %p160, %s159, 31
          %s162 = smul.addr %s161, 8
          %s163 = scalar_lea.vmem %s0, %s162
          %s164 = smul.u32 16, %s13
        $region32: #{tpu_custom_call.1} parent=27 // pred_fallthru
          _
      $region28: #{tpu_custom_call.1} parent=5 // pred_fallthru
        _
      %p165 = scmp.le.s32.totalorder 1, %s13
      %p166 = scmp.lt.s32.totalorder %s13, 3
      %p167 = pnand %p165, %p166
      %p168 = pneg %p167
      // Predicated region
      $region33: #{tpu_custom_call.1} parent=5 // pred_check
        _
      $region34: #{tpu_custom_call.1} parent=5 // pred_check_branch
        %170 = sbr.rel (%p167) target = $region36
      $region35: #{tpu_custom_call.1} parent=5 // pred_region
        %s171 = ssub.s32 %s13, 1
        %s172 = smul.u32 16, %s18
        %p173 = scmp.lt.s32.totalorder %s172, 31
        %s174 = scalar_select %p173, %s172, 31
        %s175 = smul.addr %s174, 8
        %s176 = scalar_lea.vmem %s0, %s175
        %p177 = pneg %p39
        %p178 = pneg %p36
        %p179 = pneg %p60
        %p180 = pneg %p57
        %p181 = pneg %p81
        %p182 = pneg %p78
        %p183 = pneg %p102
        %p184 = pneg %p99
        %p185 = pneg %p128
        %p186 = pneg %p125
        %s187 = sand.u32 %s115, 1
        %s188 = scalar_lea.sflag [#allocation3], %s187
        %s189 = sand.u32 %s115, 1
        %s190 = smul.addr %s189, 8
        %s191 = scalar_lea.vmem [#allocation2], %s190
        %s192 = smul.u32 16, %s18
        %p193 = scmp.lt.s32.totalorder %s192, 31
        %s194 = scalar_select %p193, %s192, 31
        %s195 = smul.addr %s194, 8
        %s196 = scalar_lea.vmem %s0, %s195
        %s197 = smul.u32 16, %s18
        %v199 = vld [vmem:[%s1] sm:$0xf]
        %v200 = vld [vmem:[%s1 + $0x4] sm:$0xf]
        %v201 = vld [vmem:[%s1 + $0x8] sm:$0xf]
        %v202 = vld [vmem:[%s1 + $0xc] sm:$0xf]
        %v203 = vld [vmem:[%s2] sm:$0xf]
        %v204 = vld [vmem:[%s2 + $0x4] sm:$0xf]
        %v205 = vld [vmem:[%s2 + $0x8] sm:$0xf]
        %v206 = vld [vmem:[%s2 + $0xc] sm:$0xf]
        %v207 = vld [vmem:[%s2 + $0x10] sm:$0xf]
        %v208 = vld [vmem:[%s2 + $0x14] sm:$0xf]
        %v209 = vld [vmem:[%s2 + $0x18] sm:$0xf]
        %v210 = vld [vmem:[%s2 + $0x1c] sm:$0xf]
        %v211 = vld [vmem:[%s2 + $0x20] sm:$0xf]
        %v212 = vld [vmem:[%s2 + $0x24] sm:$0xf]
        %v213 = vld [vmem:[%s2 + $0x28] sm:$0xf]
        %v214 = vld [vmem:[%s2 + $0x2c] sm:$0xf]
        %v215 = vld [vmem:[%s2 + $0x30] sm:$0xf]
        %v216 = vld [vmem:[%s2 + $0x34] sm:$0xf]
        %v217 = vld [vmem:[%s2 + $0x38] sm:$0xf]
        %v218 = vld [vmem:[%s2 + $0x3c] sm:$0xf]
        %v219 = vld [vmem:[%s3] sm:$0x3]
        %v220 = vld [vmem:[%s196] sm:$0xff]
        %v221 = vld [vmem:[%s196 + $0x8] sm:$0xff]
        %v222 = vld [vmem:[%s196 + $0x10] sm:$0xff]
        %v223 = vld [vmem:[%s196 + $0x18] sm:$0xff]
        %v224 = vld [vmem:[%s196 + $0x20] sm:$0xff]
        %v225 = vld [vmem:[%s196 + $0x28] sm:$0xff]
        %v226 = vld [vmem:[%s196 + $0x30] sm:$0xff]
        %v227 = vld [vmem:[%s196 + $0x38] sm:$0xff]
        %v228 = vld [vmem:[%s196 + $0x40] sm:$0xff]
        %v229 = vld [vmem:[%s196 + $0x48] sm:$0xff]
        %v230 = vld [vmem:[%s196 + $0x50] sm:$0xff]
        %v231 = vld [vmem:[%s196 + $0x58] sm:$0xff]
        %v232 = vld [vmem:[%s196 + $0x60] sm:$0xff]
        %v233 = vld [vmem:[%s196 + $0x68] sm:$0xff]
        %v234 = vld [vmem:[%s196 + $0x70] sm:$0xff]
        %v235 = vld [vmem:[%s196 + $0x78] sm:$0xff]
        %v236 = vpack.c.bf16 %v221, %v220
        %v237 = vpack.c.bf16 %v223, %v222
        %v238 = vpack.c.bf16 %v225, %v224
        %v239 = vpack.c.bf16 %v227, %v226
        %v240 = vpack.c.bf16 %v229, %v228
        %v241 = vpack.c.bf16 %v231, %v230
        %v242 = vpack.c.bf16 %v233, %v232
        %v243 = vpack.c.bf16 %v235, %v234
        %v244 = vlaneseq
        %v245 = vshrl.u32 %v244, 7
        %v246 = vsub.s32 0, %v245
        %v247 = vrot.slane %v219, %v246
        %v252 = vunpack.c.l.b16 %v199
        %v253 = vunpack.c.l.b16 %v200
        %v254 = vunpack.c.l.b16 %v201
        %v255 = vunpack.c.l.b16 %v202
        %v256 = vpack.c.b16 %v253, %v252
        %v257 = vpack.c.b16 %v255, %v254
        %vm260 = vcmask 261120
        %v262 = vsel %vm260, %v236, 0
        %v265 = vsel %vm260, %v237, 0
        %v268 = vsel %vm260, %v238, 0
        %v271 = vsel %vm260, %v239, 0
        %v274 = vsel %vm260, %v240, 0
        %v277 = vsel %vm260, %v241, 0
        %v280 = vsel %vm260, %v242, 0
        %v283 = vsel %vm260, %v243, 0
        %285 = vmatprep.subr.bf16.mxu0 0
        %286 = vmatpush1.bf16.msra.mxu0 %v256
        %287 = vmatprep.subr.bf16.mxu0 0
        %288 = vmatpush1.bf16.msra.mxu0 %v257
        %289 = vmatprep.subr.bf16.mxu0 0
        %290 = vmatpush1.bf16.msra.mxu0 0
        %291 = vmatprep.subr.bf16.mxu0 0
        %292 = vmatpush1.bf16.msra.mxu0 0
        %293 = vmatprep.subr.bf16.mxu0 0
        %294 = vmatpush1.bf16.msra.mxu0 0
        %295 = vmatprep.subr.bf16.mxu0 0
        %296 = vmatpush1.bf16.msra.mxu0 0
        %297 = vmatprep.subr.bf16.mxu0 0
        %298 = vmatpush1.bf16.msra.mxu0 0
        %299 = vmatprep.subr.bf16.mxu0 0
        %300 = vmatpush1.bf16.msra.mxu0 0
        %301 = vmatprep.subr.bf16.mxu0 0
        %302 = vmatpush1.bf16.msra.mxu0 0
        %303 = vmatprep.subr.bf16.mxu0 0
        %304 = vmatpush1.bf16.msra.mxu0 0
        %305 = vmatprep.subr.bf16.mxu0 0
        %306 = vmatpush1.bf16.msra.mxu0 0
        %307 = vmatprep.subr.bf16.mxu0 0
        %308 = vmatpush1.bf16.msra.mxu0 0
        %309 = vmatprep.subr.bf16.mxu0 0
        %310 = vmatpush1.bf16.msra.mxu0 0
        %311 = vmatprep.subr.bf16.mxu0 0
        %312 = vmatpush1.bf16.msra.mxu0 0
        %313 = vmatprep.subr.bf16.mxu0 0
        %314 = vmatpush1.bf16.msra.mxu0 0
        %315 = vmatprep.subr.bf16.mxu0 0
        %316 = vmatpush1.bf16.msra.mxu0 0
        %317 = vmatprep.mubr.bf16.mxu0 0
        %318 = vmatmul.mubr.bf16.gmra.mrb[0].mxu0 %v262
        %v319 = vpop.f32.mrb[0].mxu0
        %v320 = vadd.f32 %v247, %v319
        %v321 = vpop.f32.mrb[0].mxu0
        %v322 = vpop.f32.mrb[0].mxu0
        %v323 = vadd.f32 %v247, %v322
        %v324 = vpop.f32.mrb[0].mxu0
        %325 = vmatprep.mubr.bf16.mxu0 0
        %326 = vmatmul.mubr.bf16.gmra.mrb[0].mxu0 %v265
        %v327 = vpop.f32.mrb[0].mxu0
        %v328 = vadd.f32 %v247, %v327
        %v329 = vpop.f32.mrb[0].mxu0
        %v330 = vpop.f32.mrb[0].mxu0
        %v331 = vadd.f32 %v247, %v330
        %v332 = vpop.f32.mrb[0].mxu0
        %333 = vmatprep.mubr.bf16.mxu0 0
        %334 = vmatmul.mubr.bf16.gmra.mrb[0].mxu0 %v268
        %v335 = vpop.f32.mrb[0].mxu0
        %v336 = vadd.f32 %v247, %v335
        %v337 = vpop.f32.mrb[0].mxu0
        %v338 = vpop.f32.mrb[0].mxu0
        %v339 = vadd.f32 %v247, %v338
        %v340 = vpop.f32.mrb[0].mxu0
        %341 = vmatprep.mubr.bf16.mxu0 0
        %342 = vmatmul.mubr.bf16.gmra.mrb[0].mxu0 %v271
        %v343 = vpop.f32.mrb[0].mxu0
        %v344 = vadd.f32 %v247, %v343
        %v345 = vpop.f32.mrb[0].mxu0
        %v346 = vpop.f32.mrb[0].mxu0
        %v347 = vadd.f32 %v247, %v346
        %v348 = vpop.f32.mrb[0].mxu0
        %349 = vmatprep.mubr.bf16.mxu0 0
        %350 = vmatmul.mubr.bf16.gmra.mrb[0].mxu0 %v274
        %v351 = vpop.f32.mrb[0].mxu0
        %v352 = vadd.f32 %v247, %v351
        %v353 = vpop.f32.mrb[0].mxu0
        %v354 = vpop.f32.mrb[0].mxu0
        %v355 = vadd.f32 %v247, %v354
        %v356 = vpop.f32.mrb[0].mxu0
        %357 = vmatprep.mubr.bf16.mxu0 0
        %358 = vmatmul.mubr.bf16.gmra.mrb[0].mxu0 %v277
        %v359 = vpop.f32.mrb[0].mxu0
        %v360 = vadd.f32 %v247, %v359
        %v361 = vpop.f32.mrb[0].mxu0
        %v362 = vpop.f32.mrb[0].mxu0
        %v363 = vadd.f32 %v247, %v362
        %v364 = vpop.f32.mrb[0].mxu0
        %365 = vmatprep.mubr.bf16.mxu0 0
        %366 = vmatmul.mubr.bf16.gmra.mrb[0].mxu0 %v280
        %v367 = vpop.f32.mrb[0].mxu0
        %v368 = vadd.f32 %v247, %v367
        %v369 = vpop.f32.mrb[0].mxu0
        %v370 = vpop.f32.mrb[0].mxu0
        %v371 = vadd.f32 %v247, %v370
        %v372 = vpop.f32.mrb[0].mxu0
        %373 = vmatprep.mubr.bf16.mxu0 0
        %374 = vmatmul.mubr.bf16.gmra.mrb[0].mxu0 %v283
        %v375 = vpop.f32.mrb[0].mxu0
        %v376 = vadd.f32 %v247, %v375
        %v377 = vpop.f32.mrb[0].mxu0
        %v378 = vpop.f32.mrb[0].mxu0
        %v379 = vadd.f32 %v247, %v378
        %v380 = vpop.f32.mrb[0].mxu0
        %381 = vdwg.mxu0
        %v382 = vmax.f32 %v320, 0.0
        %v383 = vmax.f32 %v323, 0.0
        %v384 = vmax.f32 %v328, 0.0
        %v385 = vmax.f32 %v331, 0.0
        %v386 = vmax.f32 %v336, 0.0
        %v387 = vmax.f32 %v339, 0.0
        %v388 = vmax.f32 %v344, 0.0
        %v389 = vmax.f32 %v347, 0.0
        %v390 = vmax.f32 %v352, 0.0
        %v391 = vmax.f32 %v355, 0.0
        %v392 = vmax.f32 %v360, 0.0
        %v393 = vmax.f32 %v363, 0.0
        %v394 = vmax.f32 %v368, 0.0
        %v395 = vmax.f32 %v371, 0.0
        %v396 = vmax.f32 %v376, 0.0
        %v397 = vmax.f32 %v379, 0.0
        %v398 = vpack.c.bf16 %v383, %v382
        %v399 = vpack.c.bf16 %v385, %v384
        %v400 = vpack.c.bf16 %v387, %v386
        %v401 = vpack.c.bf16 %v389, %v388
        %v402 = vpack.c.bf16 %v391, %v390
        %v403 = vpack.c.bf16 %v393, %v392
        %v404 = vpack.c.bf16 %v395, %v394
        %v405 = vpack.c.bf16 %v397, %v396
        %v406 = vlaneseq
        %v407 = vshrl.u32 %v406, 7
        %v408 = vsub.s32 1, %v407
        %v409 = vrot.slane %v219, %v408
        %v426 = vunpack.c.l.b16 %v203
        %v427 = vunpack.c.l.b16 %v204
        %v428 = vunpack.c.l.b16 %v205
        %v429 = vunpack.c.l.b16 %v206
        %v430 = vunpack.c.l.b16 %v207
        %v431 = vunpack.c.l.b16 %v208
        %v432 = vunpack.c.l.b16 %v209
        %v433 = vunpack.c.l.b16 %v210
        %v434 = vunpack.c.l.b16 %v211
        %v435 = vunpack.c.l.b16 %v212
        %v436 = vunpack.c.l.b16 %v213
        %v437 = vunpack.c.l.b16 %v214
        %v438 = vunpack.c.l.b16 %v215
        %v439 = vunpack.c.l.b16 %v216
        %v440 = vunpack.c.l.b16 %v217
        %v441 = vunpack.c.l.b16 %v218
        %v442 = vpack.c.b16 %v427, %v426
        %v443 = vpack.c.b16 %v429, %v428
        %v444 = vpack.c.b16 %v431, %v430
        %v445 = vpack.c.b16 %v433, %v432
        %v446 = vpack.c.b16 %v435, %v434
        %v447 = vpack.c.b16 %v437, %v436
        %v448 = vpack.c.b16 %v439, %v438
        %v449 = vpack.c.b16 %v441, %v440
        %458 = vmatprep.subr.bf16.mxu0 0
        %459 = vmatpush1.bf16.msra.mxu0 %v442
        %460 = vmatprep.subr.bf16.mxu0 0
        %461 = vmatpush1.bf16.msra.mxu0 %v443
        %462 = vmatprep.subr.bf16.mxu0 0
        %463 = vmatpush1.bf16.msra.mxu0 %v444
        %464 = vmatprep.subr.bf16.mxu0 0
        %465 = vmatpush1.bf16.msra.mxu0 %v445
        %466 = vmatprep.subr.bf16.mxu0 0
        %467 = vmatpush1.bf16.msra.mxu0 %v446
        %468 = vmatprep.subr.bf16.mxu0 0
        %469 = vmatpush1.bf16.msra.mxu0 %v447
        %470 = vmatprep.subr.bf16.mxu0 0
        %471 = vmatpush1.bf16.msra.mxu0 %v448
        %472 = vmatprep.subr.bf16.mxu0 0
        %473 = vmatpush1.bf16.msra.mxu0 %v449
        %474 = vmatprep.subr.bf16.mxu0 0
        %475 = vmatpush1.bf16.msra.mxu0 0
        %476 = vmatprep.subr.bf16.mxu0 0
        %477 = vmatpush1.bf16.msra.mxu0 0
        %478 = vmatprep.subr.bf16.mxu0 0
        %479 = vmatpush1.bf16.msra.mxu0 0
        %480 = vmatprep.subr.bf16.mxu0 0
        %481 = vmatpush1.bf16.msra.mxu0 0
        %482 = vmatprep.subr.bf16.mxu0 0
        %483 = vmatpush1.bf16.msra.mxu0 0
        %484 = vmatprep.subr.bf16.mxu0 0
        %485 = vmatpush1.bf16.msra.mxu0 0
        %486 = vmatprep.subr.bf16.mxu0 0
        %487 = vmatpush1.bf16.msra.mxu0 0
        %488 = vmatprep.subr.bf16.mxu0 0
        %489 = vmatpush1.bf16.msra.mxu0 0
        %490 = vmatprep.mubr.bf16.mxu0 0
        %491 = vmatmul.mubr.bf16.gmra.mrb[0].mxu0 %v398
        %v492 = vpop.f32.mrb[0].mxu0
        %v493 = vadd.f32 %v409, %v492
        %v494 = vpop.f32.mrb[0].mxu0
        %v495 = vpop.f32.mrb[0].mxu0
        %v496 = vadd.f32 %v409, %v495
        %v497 = vpop.f32.mrb[0].mxu0
        %498 = vmatprep.mubr.bf16.mxu0 0
        %499 = vmatmul.mubr.bf16.gmra.mrb[0].mxu0 %v399
        %v500 = vpop.f32.mrb[0].mxu0
        %v501 = vadd.f32 %v409, %v500
        %v502 = vpop.f32.mrb[0].mxu0
        %v503 = vpop.f32.mrb[0].mxu0
        %v504 = vadd.f32 %v409, %v503
        %v505 = vpop.f32.mrb[0].mxu0
        %506 = vmatprep.mubr.bf16.mxu0 0
        %507 = vmatmul.mubr.bf16.gmra.mrb[0].mxu0 %v400
        %v508 = vpop.f32.mrb[0].mxu0
        %v509 = vadd.f32 %v409, %v508
        %v510 = vpop.f32.mrb[0].mxu0
        %v511 = vpop.f32.mrb[0].mxu0
        %v512 = vadd.f32 %v409, %v511
        %v513 = vpop.f32.mrb[0].mxu0
        %514 = vmatprep.mubr.bf16.mxu0 0
        %515 = vmatmul.mubr.bf16.gmra.mrb[0].mxu0 %v401
        %v516 = vpop.f32.mrb[0].mxu0
        %v517 = vadd.f32 %v409, %v516
        %v518 = vpop.f32.mrb[0].mxu0
        %v519 = vpop.f32.mrb[0].mxu0
        %v520 = vadd.f32 %v409, %v519
        %v521 = vpop.f32.mrb[0].mxu0
        %522 = vmatprep.mubr.bf16.mxu0 0
        %523 = vmatmul.mubr.bf16.gmra.mrb[0].mxu0 %v402
        %v524 = vpop.f32.mrb[0].mxu0
        %v525 = vadd.f32 %v409, %v524
        %v526 = vpop.f32.mrb[0].mxu0
        %v527 = vpop.f32.mrb[0].mxu0
        %v528 = vadd.f32 %v409, %v527
        %v529 = vpop.f32.mrb[0].mxu0
        %530 = vmatprep.mubr.bf16.mxu0 0
        %531 = vmatmul.mubr.bf16.gmra.mrb[0].mxu0 %v403
        %v532 = vpop.f32.mrb[0].mxu0
        %v533 = vadd.f32 %v409, %v532
        %v534 = vpop.f32.mrb[0].mxu0
        %v535 = vpop.f32.mrb[0].mxu0
        %v536 = vadd.f32 %v409, %v535
        %v537 = vpop.f32.mrb[0].mxu0
        %538 = vmatprep.mubr.bf16.mxu0 0
        %539 = vmatmul.mubr.bf16.gmra.mrb[0].mxu0 %v404
        %v540 = vpop.f32.mrb[0].mxu0
        %v541 = vadd.f32 %v409, %v540
        %v542 = vpop.f32.mrb[0].mxu0
        %v543 = vpop.f32.mrb[0].mxu0
        %v544 = vadd.f32 %v409, %v543
        %v545 = vpop.f32.mrb[0].mxu0
        %546 = vmatprep.mubr.bf16.mxu0 0
        %547 = vmatmul.mubr.bf16.gmra.mrb[0].mxu0 %v405
        %v548 = vpop.f32.mrb[0].mxu0
        %v549 = vadd.f32 %v409, %v548
        %v550 = vpop.f32.mrb[0].mxu0
        %v551 = vpop.f32.mrb[0].mxu0
        %v552 = vadd.f32 %v409, %v551
        %v553 = vpop.f32.mrb[0].mxu0
        %554 = vdwg.mxu0
        %v555 = vmax.f32 %v493, 0.0
        %v556 = vmax.f32 %v496, 0.0
        %v557 = vmax.f32 %v501, 0.0
        %v558 = vmax.f32 %v504, 0.0
        %v559 = vmax.f32 %v509, 0.0
        %v560 = vmax.f32 %v512, 0.0
        %v561 = vmax.f32 %v517, 0.0
        %v562 = vmax.f32 %v520, 0.0
        %v563 = vmax.f32 %v525, 0.0
        %v564 = vmax.f32 %v528, 0.0
        %v565 = vmax.f32 %v533, 0.0
        %v566 = vmax.f32 %v536, 0.0
        %v567 = vmax.f32 %v541, 0.0
        %v568 = vmax.f32 %v544, 0.0
        %v569 = vmax.f32 %v549, 0.0
        %v570 = vmax.f32 %v552, 0.0
        %v571 = vmax.f32 %v555, %v556
        %v572 = vrot.slane %v571, 4
        %v573 = vmax.f32 %v571, %v572
        %v574 = vrot.slane %v573, 2
        %v575 = vmax.f32 %v573, %v574
        %v576 = vrot.slane %v575, 1
        %v577 = vmax.f32 %v575, %v576
        %v578 = vmax.f32 %v557, %v558
        %v579 = vrot.slane %v578, 4
        %v580 = vmax.f32 %v578, %v579
        %v581 = vrot.slane %v580, 2
        %v582 = vmax.f32 %v580, %v581
        %v583 = vrot.slane %v582, 1
        %v584 = vmax.f32 %v582, %v583
        %v585 = vmax.f32 %v559, %v560
        %v586 = vrot.slane %v585, 4
        %v587 = vmax.f32 %v585, %v586
        %v588 = vrot.slane %v587, 2
        %v589 = vmax.f32 %v587, %v588
        %v590 = vrot.slane %v589, 1
        %v591 = vmax.f32 %v589, %v590
        %v592 = vmax.f32 %v561, %v562
        %v593 = vrot.slane %v592, 4
        %v594 = vmax.f32 %v592, %v593
        %v595 = vrot.slane %v594, 2
        %v596 = vmax.f32 %v594, %v595
        %v597 = vrot.slane %v596, 1
        %v598 = vmax.f32 %v596, %v597
        %v599 = vmax.f32 %v563, %v564
        %v600 = vrot.slane %v599, 4
        %v601 = vmax.f32 %v599, %v600
        %v602 = vrot.slane %v601, 2
        %v603 = vmax.f32 %v601, %v602
        %v604 = vrot.slane %v603, 1
        %v605 = vmax.f32 %v603, %v604
        %v606 = vmax.f32 %v565, %v566
        %v607 = vrot.slane %v606, 4
        %v608 = vmax.f32 %v606, %v607
        %v609 = vrot.slane %v608, 2
        %v610 = vmax.f32 %v608, %v609
        %v611 = vrot.slane %v610, 1
        %v612 = vmax.f32 %v610, %v611
        %v613 = vmax.f32 %v567, %v568
        %v614 = vrot.slane %v613, 4
        %v615 = vmax.f32 %v613, %v614
        %v616 = vrot.slane %v615, 2
        %v617 = vmax.f32 %v615, %v616
        %v618 = vrot.slane %v617, 1
        %v619 = vmax.f32 %v617, %v618
        %v620 = vmax.f32 %v569, %v570
        %v621 = vrot.slane %v620, 4
        %v622 = vmax.f32 %v620, %v621
        %v623 = vrot.slane %v622, 2
        %v624 = vmax.f32 %v622, %v623
        %v625 = vrot.slane %v624, 1
        %v626 = vmax.f32 %v624, %v625
        %vm635 = vcmask 1041409
        %v636 = vsel %vm635, %v584, %v577
        %vm637 = vcmask 1042434
        %v638 = vsel %vm637, %v591, %v636
        %vm639 = vcmask 1043459
        %v640 = vsel %vm639, %v598, %v638
        %vm641 = vcmask 1044484
        %v642 = vsel %vm641, %v605, %v640
        %vm643 = vcmask 1045509
        %v644 = vsel %vm643, %v612, %v642
        %vm645 = vcmask 1046534
        %v646 = vsel %vm645, %v619, %v644
        %vm647 = vcmask 1047559
        %v648 = vsel %vm647, %v626, %v646
        %650 = vst [vmem:[%s191] sm:$0xff] %v648
        %s651 = sand.u32 %s115, 1
        %s652 = scalar_lea.sflag [#allocation3], %s651
        %s653 = sand.u32 %s115, 1
        %s654 = smul.addr %s653, 8
        %s655 = scalar_lea.vmem [#allocation2], %s654
        // Predicated region
        $region37: #{tpu_custom_call.1} parent=35 // pred_check
          %p656 = pneg %p125
        $region38: #{tpu_custom_call.1} parent=35 // pred_check_branch
          %658 = sbr.rel (%p656) target = $region40
        $region39: #{tpu_custom_call.1} parent=35 // pred_region
          %s660 = ssub.s32 128, 128
          %661 = vsyncadd %s652, %s660
          %s662 = smul.addr %s18, 128
          %s663 = scalar_lea.hbm %s4, %s662
          %s665 = sshll.u32 %s655, 4
          %s666 = int_to_ptr.vmem [resolvable:$true] %s665
          %668 = dma.vmem_to_hbm [thread:$0]  %s666, 128, %s663, %s652
        $region40: #{tpu_custom_call.1} parent=35 // pred_fallthru
          _
      $region36: #{tpu_custom_call.1} parent=5 // pred_fallthru
        _
      %p669 = scmp.le.s32.totalorder 2, %s13
      // Predicated region
      $region41: #{tpu_custom_call.1} parent=5 // pred_check
        %p670 = pneg %p669
      $region42: #{tpu_custom_call.1} parent=5 // pred_check_branch
        %672 = sbr.rel (%p670) target = $region44
      $region43: #{tpu_custom_call.1} parent=5 // pred_region
        %s673 = ssub.s32 %s13, 2
        // Predicated region
        $region45: #{tpu_custom_call.1} parent=43 // pred_check
          %p674 = pneg %p131
        $region46: #{tpu_custom_call.1} parent=43 // pred_check_branch
          %676 = sbr.rel (%p674) target = $region48
        $region47: #{tpu_custom_call.1} parent=43 // pred_region
          %s677 = sand.u32 %s116, 1
          %s678 = scalar_lea.sflag [#allocation3], %s677
          %s679 = sand.u32 %s116, 1
          %s680 = smul.addr %s679, 8
          %s681 = scalar_lea.vmem [#allocation2], %s680
          %682 = dma.done %s678, 128
        $region48: #{tpu_custom_call.1} parent=43 // pred_fallthru
          _
      $region44: #{tpu_custom_call.1} parent=5 // pred_fallthru
        _
    $region6: #{tpu_custom_call.1} parent=1 // loop_footer
      %s17 = sadd.s32 1, %s13
    $region7: #{tpu_custom_call.1} parent=1 // loop_footer_branch
      %12 = sbr.rel target = $region3
    $region8: #{tpu_custom_call.1} parent=1 // loop_exit
      _
    %683 = vsyncpa [#allocation3], 1
    %s684 = scalar_lea.sflag [#allocation3], 1
    %685 = vsyncpa %s684, 1

</llo_original>
